<compile_context>
chip_gen: v7x
topology: tpu7x:2x2x1
jax: 0.10.0
libtpu: 0.0.40
codegen_flags: <defaults>
</compile_context>

<pallas_src>
import functools

import numpy as np
import jax
import jax.numpy as jnp
from jax import lax
from jax.experimental import pallas as pl
from jax.experimental.pallas import tpu as pltpu

EPS = 1e-5
HIGH = jax.lax.Precision.HIGHEST       # used by the plain-JAX reference only


# ---------------------------------------------------------------------------
# Fused bottleneck kernel (a block of B images, stacked along rows, per step)
# ---------------------------------------------------------------------------
def _bottleneck_kernel(x_ref, w1_ref, b1_ref, w2_ref, b2_ref,
                       wf1_ref, bf1_ref, wf2_ref, bf2_ref,
                       w3_ref, b3_ref, o_ref, *, B, H, W, gw):
    """Whole ResNeSt bottleneck; all activations stay lane-dense in VMEM/vregs.

    x_ref : (B*H, W*cin) f32      residual / conv1 input (lane-dense)
    w*_ref: bf16 weights with BN scale + spatial/group structure pre-folded
    b*_ref: (1, C) f32 folded BN biases (w-tiled where needed)
    o_ref : (B*H, W*cout) f32
    """
    bf16 = jnp.bfloat16
    BH = B * H
    WG = W * gw

    x = x_ref[...]                                          # (BH, W*cin) f32

    # ---- conv1 (1x1, block-diag over w) + bn1(folded) + relu ----
    h1 = jnp.dot(x.astype(bf16), w1_ref[...],
                 preferred_element_type=jnp.float32)
    h1 = jnp.maximum(h1 + b1_ref[...], 0.0)                 # (BH, WG) f32

    # ---- grouped 3x3 conv + bn0(folded) + relu: ONE fused matmul ----
    # dy = -1/0/+1 row shifts materialized via zero-row pad + slices; the
    # per-image row masks also stop leakage across images when B > 1.
    # dx taps and their boundary zeros live inside the banded weight w2_ref.
    rid = lax.broadcasted_iota(jnp.int32, (BH, 1), 0) % H   # row within image
    zrow = jnp.zeros((1, WG), jnp.float32)
    h1p = jnp.concatenate([zrow, h1, zrow], axis=0)         # (BH + 2, WG)
    up = jnp.where(rid >= 1, h1p[0:BH, :], 0.0)             # row h-1 (or 0)
    dn = jnp.where(rid <= H - 2, h1p[2:BH + 2, :], 0.0)     # row h+1 (or 0)
    lhs = jnp.concatenate([up, h1, dn], axis=1).astype(bf16)   # (BH, 3*WG)
    y = jnp.dot(lhs, w2_ref[...], preferred_element_type=jnp.float32)
    y = jnp.maximum(y + b2_ref[...], 0.0)                   # (BH, 2*WG) f32
    # y lane layout: r*WG + w*gw + c  (radix-major, w-tiled)

    # ---- Split-Attention (radix=2, cardinality=1) ----
    y3 = y.reshape(B, H, 2 * WG)
    gap = jnp.sum(y3, axis=1)                               # (B, 2*WG)
    # (1/(H*W) pooling, radix-sum and bn1s are folded into wf1/bf1)
    h = jnp.dot(gap.astype(bf16), wf1_ref[...],
                preferred_element_type=jnp.float32)
    h = jnp.maximum(h + bf1_ref[...], 0.0)                  # (B, inter)
    a = jnp.dot(h.astype(bf16), wf2_ref[...],
                preferred_element_type=jnp.float32) + bf2_ref[...]  # (B, 2*WG)
    a0 = a[:, :WG]
    a1 = a[:, WG:]
    m = jnp.maximum(a0, a1)
    e0 = jnp.exp(a0 - m)
    e1 = jnp.exp(a1 - m)
    inv = pl.reciprocal(e0 + e1, approx=True)               # EUP, free slot
    att0 = (e0 * inv)[:, None, :]                           # (B, 1, WG)
    att1 = (e1 * inv)[:, None, :]
    out2 = (y3[:, :, :WG] * att0 + y3[:, :, WG:] * att1).reshape(BH, WG)

    # ---- conv3 (1x1, block-diag) + bn3(folded) + residual + relu ----
    out = jnp.dot(out2.astype(bf16), w3_ref[...],
                  preferred_element_type=jnp.float32)
    out = jnp.maximum(out + b3_ref[...] + x, 0.0)           # (BH, W*cout)
    o_ref[...] = out.astype(o_ref.dtype)                    # lane-dense store


# ---------------------------------------------------------------------------
# Wrapper
# ---------------------------------------------------------------------------
def bottleneck_pallas(x_nhwc, params, *, gw, block_b):
    (w1, b1, w2, b2, wf1, bf1, wf2, bf2, w3, b3) = params
    N, H, W, cin = x_nhwc.shape
    cout = w3.shape[1] // W
    BH = block_b * H
    nb = N // block_b
    x2 = x_nhwc.reshape(N * H, W * cin)          # pure view (NHWC row-major)

    kernel = functools.partial(_bottleneck_kernel, B=block_b, H=H, W=W, gw=gw)

    def row_blk(i):
        return (i, 0)

    def whole(i):
        return (0, 0)

    in_specs = [pl.BlockSpec((BH, W * cin), row_blk)]
    for p in (w1, b1, w2, b2, wf1, bf1, wf2, bf2, w3, b3):
        in_specs.append(pl.BlockSpec(p.shape, whole))
    # TODO(synk): weights are grid-invariant; pipeline_mode=pl.Buffered(1)
    # would drop their redundant second buffer but is skipped for lowering
    # robustness (negligible at ~37 KiB of weights).

    out = pl.pallas_call(
        kernel,
        grid=(nb,),
        in_specs=in_specs,
        out_specs=pl.BlockSpec((BH, W * cout), row_blk),
        out_shape=jax.ShapeDtypeStruct((N * H, W * cout), x_nhwc.dtype),
        compiler_params=pltpu.CompilerParams(
            dimension_semantics=("parallel",)),   # v7x: batch over 2 TCs
    )(x2, w1, b1, w2, b2, wf1, bf1, wf2, bf2, w3, b3)
    return out.reshape(N, H, W, cout)


# ---------------------------------------------------------------------------
# Main: deterministic params, run fused kernel, validate vs plain-JAX reference
# ---------------------------------------------------------------------------
if __name__ == "__main__":
    key = jax.random.PRNGKey(0)
    ks = jax.random.split(key, 16)

    # --- module configuration (small) ---
    N, H, W = 2, 8, 8
    planes = 4
    inplanes = planes * 4                  # 16, residual needs no downsample
    cardinality = 1
    radix = 2
    bottleneck_width = 64
    group_width = int(planes * (bottleneck_width / 64.0)) * cardinality   # 4
    inter_channels = max(group_width * radix // 4, 32)                    # 32
    gconv_groups = cardinality * radix                                    # 2
    cin_per_g = group_width // gconv_groups                               # 2
    cout_per_g = (group_width * radix) // gconv_groups                    # 4
    cout = planes * 4                                                     # 16
    gw = group_width
    WG = W * gw
    # TODO(synk): dropblock_prob=0, avd=False, downsample=None, stride=1 paths
    # only; DropBlock2D itself raises NotImplementedError upstream.

    # --- deterministic parameters (torch conv layout OIHW) ---
    w1_t = jax.random.normal(ks[0], (group_width, inplanes, 1, 1), jnp.float32) * 0.1
    w2_t = jax.random.normal(ks[1], (group_width * radix, cin_per_g, 3, 3), jnp.float32) * 0.1
    w3_t = jax.random.normal(ks[2], (planes * 4, group_width, 1, 1), jnp.float32) * 0.1
    fc1_w_t = jax.random.normal(ks[3], (inter_channels, group_width, 1, 1), jnp.float32) * 0.1
    fc1_b = jax.random.normal(ks[4], (inter_channels,), jnp.float32) * 0.1
    fc2_w_t = jax.random.normal(ks[5], (group_width * radix, inter_channels, 1, 1), jnp.float32) * 0.1
    fc2_b = jax.random.normal(ks[6], (group_width * radix,), jnp.float32) * 0.1

    def bn_params(k, c):
        k1, k2, k3, k4 = jax.random.split(k, 4)
        gamma = 1.0 + 0.1 * jax.random.normal(k1, (c,), jnp.float32)
        beta = 0.1 * jax.random.normal(k2, (c,), jnp.float32)
        mean = 0.1 * jax.random.normal(k3, (c,), jnp.float32)
        var = jnp.abs(jax.random.normal(k4, (c,), jnp.float32)) + 0.5
        return gamma, beta, mean, var

    bn1 = bn_params(ks[7], group_width)                 # after conv1
    bn0 = bn_params(ks[8], group_width * radix)         # SplAt bn0
    bn1s = bn_params(ks[9], inter_channels)             # SplAt bn1
    bn3 = bn_params(ks[10], planes * 4)                 # after conv3

    x = jax.random.normal(ks[11], (N, H, W, inplanes), jnp.float32)

    def fold_bn(gamma, beta, mean, var):
        scale = gamma / jnp.sqrt(var + EPS)
        bias = beta - mean * scale
        return np.asarray(scale), np.asarray(bias)

    # ---- conv1: block-diagonal over w, BN scale folded, bias tiled ----
    s1, bb1 = fold_bn(*bn1)
    w1_eff = np.asarray(w1_t[:, :, 0, 0]).T * s1[None, :]          # (cin, gw)
    w1_bd = np.zeros((W * inplanes, WG), np.float32)
    for w in range(W):
        w1_bd[w * inplanes:(w + 1) * inplanes, w * gw:(w + 1) * gw] = w1_eff
    b1_row = np.tile(bb1, W)[None, :]                              # (1, WG)

    # ---- grouped 3x3 conv: banded block weight (3*WG, 2*WG) ----
    # rows: (dy+1)*WG + w_in*gw + ci   (matches [up | h1 | dn] LHS lanes)
    # cols: r*WG + w_out*gw + c        (radix-major, w-tiled output)
    s0, bb0 = fold_bn(*bn0)
    w2_src = np.asarray(w2_t)                                      # (2gw, cin_g, 3, 3)
    kfull = np.zeros((3, 3, gw, gw * radix), np.float32)
    for co in range(gw * radix):
        g = co // cout_per_g
        for ci_l in range(cin_per_g):
            kfull[:, :, g * cin_per_g + ci_l, co] = w2_src[co, ci_l]
    w2_band = np.zeros((3 * WG, radix * WG), np.float32)
    for dy in (-1, 0, 1):
        for w_in in range(W):
            for w_out in range(W):
                dx = w_in - w_out
                if abs(dx) > 1:
                    continue
                for ci in range(gw):
                    for r in range(radix):
                        for c in range(gw):
                            co = r * gw + c
                            row = (dy + 1) * WG + w_in * gw + ci
                            col = r * WG + w_out * gw + c
                            w2_band[row, col] = kfull[dy + 1, dx + 1, ci, co] * s0[co]
    b2_row = np.zeros((1, radix * WG), np.float32)
    for r in range(radix):
        for w in range(W):
            b2_row[0, r * WG + w * gw:r * WG + (w + 1) * gw] = bb0[r * gw:(r + 1) * gw]

    # ---- split-attention fc1/fc2: pooling + radix-sum + w-tiling folded ----
    s1s, b1s_ = fold_bn(*bn1s)
    wf1_eff = np.asarray(fc1_w_t[:, :, 0, 0]).T * s1s[None, :]     # (gw, inter)
    wf1_big = np.zeros((radix * WG, inter_channels), np.float32)
    for r in range(radix):
        for w in range(W):
            wf1_big[r * WG + w * gw:r * WG + (w + 1) * gw, :] = wf1_eff / float(H * W)
    bf1_row = (np.asarray(fc1_b) * s1s + b1s_)[None, :]            # (1, inter)

    wf2_eff = np.asarray(fc2_w_t[:, :, 0, 0]).T                    # (inter, 2gw)
    fc2_b_np = np.asarray(fc2_b)
    wf2_tiled = np.zeros((inter_channels, radix * WG), np.float32)
    bf2_row = np.zeros((1, radix * WG), np.float32)
    for r in range(radix):
        for w in range(W):
            wf2_tiled[:, r * WG + w * gw:r * WG + (w + 1) * gw] = wf2_eff[:, r * gw:(r + 1) * gw]
            bf2_row[0, r * WG + w * gw:r * WG + (w + 1) * gw] = fc2_b_np[r * gw:(r + 1) * gw]

    # ---- conv3: block-diagonal over w, BN scale folded, bias tiled ----
    s3, bb3 = fold_bn(*bn3)
    w3_eff = np.asarray(w3_t[:, :, 0, 0]).T * s3[None, :]          # (gw, cout)
    w3_bd = np.zeros((WG, W * cout), np.float32)
    for w in range(W):
        w3_bd[w * gw:(w + 1) * gw, w * cout:(w + 1) * cout] = w3_eff
    b3_row = np.tile(bb3, W)[None, :]                              # (1, W*cout)

    bf16 = jnp.bfloat16
    f32 = jnp.float32
    params = (jnp.asarray(w1_bd, bf16), jnp.asarray(b1_row, f32),
              jnp.asarray(w2_band, bf16), jnp.asarray(b2_row, f32),
              jnp.asarray(wf1_big, bf16), jnp.asarray(bf1_row, f32),
              jnp.asarray(wf2_tiled, bf16), jnp.asarray(bf2_row, f32),
              jnp.asarray(w3_bd, bf16), jnp.asarray(b3_row, f32))

    # Images per grid step: 2-way batch split (one fat block per TensorCore on
    # v7x) when N is even, otherwise the whole batch in a single step.
    block_b = N // 2 if (N >= 2 and N % 2 == 0) else N

    fwd = jax.jit(functools.partial(bottleneck_pallas, params=params,
                                    gw=gw, block_b=block_b))

    # ------------------ plain-JAX f32 reference for validation ------------------
    def conv2d_ref(xv, w_oihw, stride=1, pad=0, groups=1):
        w_hwio = jnp.transpose(w_oihw, (2, 3, 1, 0))
        return jax.lax.conv_general_dilated(
            xv, w_hwio, (stride, stride), [(pad, pad), (pad, pad)],
            dimension_numbers=("NHWC", "HWIO", "NHWC"),
            feature_group_count=groups, precision=HIGH)

    def bn_ref(xv, gamma, beta, mean, var):
        return (xv - mean) * gamma / jnp.sqrt(var + EPS) + beta

    def reference_forward(x_nhwc):
        out = jax.nn.relu(bn_ref(conv2d_ref(x_nhwc, w1_t), *bn1))
        z = jax.nn.relu(bn_ref(conv2d_ref(out, w2_t, pad=1, groups=gconv_groups), *bn0))
        z0, z1 = z[..., :group_width], z[..., group_width:]
        gap = jnp.mean(z0 + z1, axis=(1, 2), keepdims=True)
        h = jax.nn.relu(bn_ref(conv2d_ref(gap, fc1_w_t) + fc1_b, *bn1s))
        a = conv2d_ref(h, fc2_w_t) + fc2_b                      # (N,1,1,2*gw)
        a = jax.nn.softmax(a.reshape(N, radix, group_width), axis=1)
        att0 = a[:, 0].reshape(N, 1, 1, group_width)
        att1 = a[:, 1].reshape(N, 1, 1, group_width)
        out2 = att0 * z0 + att1 * z1
        out3 = bn_ref(conv2d_ref(out2, w3_t), *bn3)
        return jax.nn.relu(out3 + x_nhwc)

    result = jax.block_until_ready(fwd(x))
    ref = jax.block_until_ready(jax.jit(reference_forward)(x))

    # bf16 matmul operands (f32 accumulation) vs f32 HIGHEST reference.
    np.testing.assert_allclose(np.asarray(result), np.asarray(ref),
                               rtol=1e-2, atol=1e-2)
    print("KERNEL_OK")
</pallas_src>

<mosaic_0001>
module attributes {stable_mosaic.version = 11 : i64} {
  func.func @_bottleneck_kernel(%arg0: i32, %arg1: memref<8x128xf32, #tpu.memory_space<vmem>>, %arg2: memref<128x32xbf16, #tpu.memory_space<vmem>>, %arg3: memref<1x32xf32, #tpu.memory_space<vmem>>, %arg4: memref<96x64xbf16, #tpu.memory_space<vmem>>, %arg5: memref<1x64xf32, #tpu.memory_space<vmem>>, %arg6: memref<64x32xbf16, #tpu.memory_space<vmem>>, %arg7: memref<1x32xf32, #tpu.memory_space<vmem>>, %arg8: memref<32x64xbf16, #tpu.memory_space<vmem>>, %arg9: memref<1x64xf32, #tpu.memory_space<vmem>>, %arg10: memref<32x128xbf16, #tpu.memory_space<vmem>>, %arg11: memref<1x128xf32, #tpu.memory_space<vmem>>, %arg12: memref<8x128xf32, #tpu.memory_space<vmem>>) attributes {dimension_semantics = [#tpu.dimension_semantics<parallel>], iteration_bounds = array<i64: 2>, scalar_prefetch = 0 : i64, scratch_operands = 0 : i64, tpu.core_type = #tpu.core_type<tc>, window_params = [{transform_indices = @transform_0, window_bounds = array<i64: 8, 128>}, {pipeline_mode = #tpu.pipeline_mode<synchronous>, transform_indices = @transform_1, window_bounds = array<i64: 128, 32>}, {pipeline_mode = #tpu.pipeline_mode<synchronous>, transform_indices = @transform_2, window_bounds = array<i64: 1, 32>}, {pipeline_mode = #tpu.pipeline_mode<synchronous>, transform_indices = @transform_3, window_bounds = array<i64: 96, 64>}, {pipeline_mode = #tpu.pipeline_mode<synchronous>, transform_indices = @transform_4, window_bounds = array<i64: 1, 64>}, {pipeline_mode = #tpu.pipeline_mode<synchronous>, transform_indices = @transform_5, window_bounds = array<i64: 64, 32>}, {pipeline_mode = #tpu.pipeline_mode<synchronous>, transform_indices = @transform_6, window_bounds = array<i64: 1, 32>}, {pipeline_mode = #tpu.pipeline_mode<synchronous>, transform_indices = @transform_7, window_bounds = array<i64: 32, 64>}, {pipeline_mode = #tpu.pipeline_mode<synchronous>, transform_indices = @transform_8, window_bounds = array<i64: 1, 64>}, {pipeline_mode = #tpu.pipeline_mode<synchronous>, transform_indices = @transform_9, window_bounds = array<i64: 32, 128>}, {pipeline_mode = #tpu.pipeline_mode<synchronous>, transform_indices = @transform_10, window_bounds = array<i64: 1, 128>}, {transform_indices = @transform_11, window_bounds = array<i64: 8, 128>}]} {
    %c0 = arith.constant 0 : index
    %c0_0 = arith.constant 0 : index
    %0 = vector.load %arg1[%c0, %c0_0] : memref<8x128xf32, #tpu.memory_space<vmem>>, vector<8x128xf32>
    %1 = arith.truncf %0 : vector<8x128xf32> to vector<8x128xbf16>
    %c0_1 = arith.constant 0 : index
    %c0_2 = arith.constant 0 : index
    %2 = vector.load %arg2[%c0_1, %c0_2] : memref<128x32xbf16, #tpu.memory_space<vmem>>, vector<128x32xbf16>
    %cst = arith.constant dense<0.000000e+00> : vector<8x32xf32>
    %3 = tpu.matmul %1, %2, %cst {dimension_numbers = #tpu.dot_dimension_numbers<[1], [0], [0], [1], [0, 0, 1, 1], [], []>} : vector<8x128xbf16>, vector<128x32xbf16>, vector<8x32xf32> -> vector<8x32xf32>
    %c0_3 = arith.constant 0 : index
    %c0_4 = arith.constant 0 : index
    %4 = vector.load %arg3[%c0_3, %c0_4] : memref<1x32xf32, #tpu.memory_space<vmem>>, vector<1x32xf32>
    %5 = vector.broadcast %4 : vector<1x32xf32> to vector<8x32xf32>
    %6 = arith.addf %3, %5 : vector<8x32xf32>
    %cst_5 = arith.constant 0.000000e+00 : f32
    %7 = vector.broadcast %cst_5 : f32 to vector<8x32xf32>
    %8 = arith.maximumf %6, %7 : vector<8x32xf32>
    %9 = tpu.iota {dimensions = array<i32: 0>} : vector<8x1xi32>
    %c8_i32 = arith.constant 8 : i32
    %c0_i32 = arith.constant 0 : i32
    %10 = arith.cmpi eq, %c8_i32, %c0_i32 : i32
    %c1_i32 = arith.constant 1 : i32
    %11 = arith.select %10, %c1_i32, %c8_i32 : i32
    %12 = vector.broadcast %11 : i32 to vector<8x1xi32>
    %13 = arith.remsi %9, %12 : vector<8x1xi32>
    %c0_i32_6 = arith.constant 0 : i32
    %14 = vector.broadcast %c0_i32_6 : i32 to vector<8x1xi32>
    %15 = arith.cmpi ne, %13, %14 : vector<8x1xi32>
    %c0_i32_7 = arith.constant 0 : i32
    %16 = vector.broadcast %c0_i32_7 : i32 to vector<8x1xi32>
    %17 = arith.cmpi slt, %13, %16 : vector<8x1xi32>
    %c0_i32_8 = arith.constant 0 : i32
    %18 = arith.cmpi slt, %11, %c0_i32_8 : i32
    %19 = vector.broadcast %18 : i1 to vector<8x1xi1>
    %20 = vector.broadcast %19 : vector<8x1xi1> to vector<8x1xi1>
    %21 = arith.xori %17, %20 : vector<8x1xi1>
    %22 = arith.andi %21, %15 : vector<8x1xi1>
    %23 = vector.broadcast %11 : i32 to vector<8x1xi32>
    %24 = arith.addi %13, %23 : vector<8x1xi32>
    %25 = arith.select %22, %24, %13 : vector<8x1xi1>, vector<8x1xi32>
    %cst_9 = arith.constant 0.000000e+00 : f32
    %26 = vector.broadcast %cst_9 : f32 to vector<1x32xf32>
    %27 = tpu.concatenate %26, %8, %26 in 0 : vector<1x32xf32>, vector<8x32xf32>, vector<1x32xf32> -> vector<10x32xf32>
    %c1_i32_10 = arith.constant 1 : i32
    %28 = vector.broadcast %c1_i32_10 : i32 to vector<8x1xi32>
    %29 = arith.cmpi sge, %25, %28 : vector<8x1xi32>
    %30 = vector.extract_strided_slice %27 {offsets = [0, 0], sizes = [8, 32], strides = [1, 1]} : vector<10x32xf32> to vector<8x32xf32>
    %cst_11 = arith.constant 0.000000e+00 : f32
    %31 = vector.shape_cast %29 : vector<8x1xi1> to vector<8x1xi1>
    %32 = vector.broadcast %31 : vector<8x1xi1> to vector<8x32xi1>
    %33 = vector.broadcast %cst_11 : f32 to vector<8x32xf32>
    %34 = arith.select %32, %30, %33 : vector<8x32xi1>, vector<8x32xf32>
    %c6_i32 = arith.constant 6 : i32
    %35 = vector.broadcast %c6_i32 : i32 to vector<8x1xi32>
    %36 = arith.cmpi sle, %25, %35 : vector<8x1xi32>
    %37 = vector.extract_strided_slice %27 {offsets = [2, 0], sizes = [8, 32], strides = [1, 1]} : vector<10x32xf32> to vector<8x32xf32>
    %cst_12 = arith.constant 0.000000e+00 : f32
    %38 = vector.shape_cast %36 : vector<8x1xi1> to vector<8x1xi1>
    %39 = vector.broadcast %38 : vector<8x1xi1> to vector<8x32xi1>
    %40 = vector.broadcast %cst_12 : f32 to vector<8x32xf32>
    %41 = arith.select %39, %37, %40 : vector<8x32xi1>, vector<8x32xf32>
    %42 = tpu.concatenate %34, %8, %41 in 1 : vector<8x32xf32>, vector<8x32xf32>, vector<8x32xf32> -> vector<8x96xf32>
    %43 = arith.truncf %42 : vector<8x96xf32> to vector<8x96xbf16>
    %c0_13 = arith.constant 0 : index
    %c0_14 = arith.constant 0 : index
    %44 = vector.load %arg4[%c0_13, %c0_14] : memref<96x64xbf16, #tpu.memory_space<vmem>>, vector<96x64xbf16>
    %cst_15 = arith.constant dense<0.000000e+00> : vector<8x64xf32>
    %45 = tpu.matmul %43, %44, %cst_15 {dimension_numbers = #tpu.dot_dimension_numbers<[1], [0], [0], [1], [0, 0, 1, 1], [], []>} : vector<8x96xbf16>, vector<96x64xbf16>, vector<8x64xf32> -> vector<8x64xf32>
    %c0_16 = arith.constant 0 : index
    %c0_17 = arith.constant 0 : index
    %46 = vector.load %arg5[%c0_16, %c0_17] : memref<1x64xf32, #tpu.memory_space<vmem>>, vector<1x64xf32>
    %47 = vector.broadcast %46 : vector<1x64xf32> to vector<8x64xf32>
    %48 = arith.addf %45, %47 : vector<8x64xf32>
    %cst_18 = arith.constant 0.000000e+00 : f32
    %49 = vector.broadcast %cst_18 : f32 to vector<8x64xf32>
    %50 = arith.maximumf %48, %49 : vector<8x64xf32>
    %51 = vector.shape_cast %50 : vector<8x64xf32> to vector<1x8x64xf32>
    %cst_19 = arith.constant dense<0.000000e+00> : vector<1x64xf32>
    %52 = vector.multi_reduction <add>, %51, %cst_19 [1] : vector<1x8x64xf32> to vector<1x64xf32>
    %53 = arith.truncf %52 : vector<1x64xf32> to vector<1x64xbf16>
    %c0_20 = arith.constant 0 : index
    %c0_21 = arith.constant 0 : index
    %54 = vector.load %arg6[%c0_20, %c0_21] : memref<64x32xbf16, #tpu.memory_space<vmem>>, vector<64x32xbf16>
    %cst_22 = arith.constant dense<0.000000e+00> : vector<1x32xf32>
    %55 = tpu.matmul %53, %54, %cst_22 {dimension_numbers = #tpu.dot_dimension_numbers<[1], [0], [0], [1], [0, 0, 1, 1], [], []>} : vector<1x64xbf16>, vector<64x32xbf16>, vector<1x32xf32> -> vector<1x32xf32>
    %c0_23 = arith.constant 0 : index
    %c0_24 = arith.constant 0 : index
    %56 = vector.load %arg7[%c0_23, %c0_24] : memref<1x32xf32, #tpu.memory_space<vmem>>, vector<1x32xf32>
    %57 = arith.addf %55, %56 : vector<1x32xf32>
    %cst_25 = arith.constant 0.000000e+00 : f32
    %58 = vector.broadcast %cst_25 : f32 to vector<1x32xf32>
    %59 = arith.maximumf %57, %58 : vector<1x32xf32>
    %60 = arith.truncf %59 : vector<1x32xf32> to vector<1x32xbf16>
    %c0_26 = arith.constant 0 : index
    %c0_27 = arith.constant 0 : index
    %61 = vector.load %arg8[%c0_26, %c0_27] : memref<32x64xbf16, #tpu.memory_space<vmem>>, vector<32x64xbf16>
    %cst_28 = arith.constant dense<0.000000e+00> : vector<1x64xf32>
    %62 = tpu.matmul %60, %61, %cst_28 {dimension_numbers = #tpu.dot_dimension_numbers<[1], [0], [0], [1], [0, 0, 1, 1], [], []>} : vector<1x32xbf16>, vector<32x64xbf16>, vector<1x64xf32> -> vector<1x64xf32>
    %c0_29 = arith.constant 0 : index
    %c0_30 = arith.constant 0 : index
    %63 = vector.load %arg9[%c0_29, %c0_30] : memref<1x64xf32, #tpu.memory_space<vmem>>, vector<1x64xf32>
    %64 = arith.addf %62, %63 : vector<1x64xf32>
    %65 = vector.extract_strided_slice %64 {offsets = [0, 0], sizes = [1, 32], strides = [1, 1]} : vector<1x64xf32> to vector<1x32xf32>
    %66 = vector.extract_strided_slice %64 {offsets = [0, 32], sizes = [1, 32], strides = [1, 1]} : vector<1x64xf32> to vector<1x32xf32>
    %67 = arith.maximumf %65, %66 : vector<1x32xf32>
    %68 = arith.subf %65, %67 : vector<1x32xf32>
    %69 = math.exp %68 : vector<1x32xf32>
    %70 = arith.subf %66, %67 : vector<1x32xf32>
    %71 = math.exp %70 : vector<1x32xf32>
    %72 = arith.addf %69, %71 : vector<1x32xf32>
    %73 = tpu.reciprocal %72 {approx = true} : vector<1x32xf32> -> vector<1x32xf32>
    %74 = arith.mulf %69, %73 : vector<1x32xf32>
    %75 = vector.shape_cast %74 : vector<1x32xf32> to vector<1x1x32xf32>
    %76 = arith.mulf %71, %73 : vector<1x32xf32>
    %77 = vector.shape_cast %76 : vector<1x32xf32> to vector<1x1x32xf32>
    %78 = vector.extract_strided_slice %51 {offsets = [0, 0, 0], sizes = [1, 8, 32], strides = [1, 1, 1]} : vector<1x8x64xf32> to vector<1x8x32xf32>
    %79 = vector.broadcast %75 : vector<1x1x32xf32> to vector<1x8x32xf32>
    %80 = arith.mulf %78, %79 : vector<1x8x32xf32>
    %81 = vector.extract_strided_slice %51 {offsets = [0, 0, 32], sizes = [1, 8, 32], strides = [1, 1, 1]} : vector<1x8x64xf32> to vector<1x8x32xf32>
    %82 = vector.broadcast %77 : vector<1x1x32xf32> to vector<1x8x32xf32>
    %83 = arith.mulf %81, %82 : vector<1x8x32xf32>
    %84 = arith.addf %80, %83 : vector<1x8x32xf32>
    %85 = vector.shape_cast %84 : vector<1x8x32xf32> to vector<8x32xf32>
    %86 = arith.truncf %85 : vector<8x32xf32> to vector<8x32xbf16>
    %c0_31 = arith.constant 0 : index
    %c0_32 = arith.constant 0 : index
    %87 = vector.load %arg10[%c0_31, %c0_32] : memref<32x128xbf16, #tpu.memory_space<vmem>>, vector<32x128xbf16>
    %cst_33 = arith.constant dense<0.000000e+00> : vector<8x128xf32>
    %88 = tpu.matmul %86, %87, %cst_33 {dimension_numbers = #tpu.dot_dimension_numbers<[1], [0], [0], [1], [0, 0, 1, 1], [], []>} : vector<8x32xbf16>, vector<32x128xbf16>, vector<8x128xf32> -> vector<8x128xf32>
    %c0_34 = arith.constant 0 : index
    %c0_35 = arith.constant 0 : index
    %89 = vector.load %arg11[%c0_34, %c0_35] : memref<1x128xf32, #tpu.memory_space<vmem>>, vector<1x128xf32>
    %90 = vector.broadcast %89 : vector<1x128xf32> to vector<8x128xf32>
    %91 = arith.addf %88, %90 : vector<8x128xf32>
    %92 = arith.addf %91, %0 : vector<8x128xf32>
    %cst_36 = arith.constant 0.000000e+00 : f32
    %93 = vector.broadcast %cst_36 : f32 to vector<8x128xf32>
    %94 = arith.maximumf %92, %93 : vector<8x128xf32>
    %c0_37 = arith.constant 0 : index
    %c0_38 = arith.constant 0 : index
    %95 = vector.load %arg12[%c0_37, %c0_38] : memref<8x128xf32, #tpu.memory_space<vmem>>, vector<8x128xf32>
    tpu.vector_store %arg12[%c0_37, %c0_38], %94 {strides = array<i32>} : memref<8x128xf32, #tpu.memory_space<vmem>>, vector<8x128xf32>,
    return
  }
  func.func @transform_0(%arg0: i32) -> (i32, i32) {
    %c0_i32 = arith.constant 0 : i32
    %c0_i32_0 = arith.constant 0 : i32
    return %arg0, %c0_i32 : i32, i32
  }
  func.func @transform_1(%arg0: i32) -> (i32, i32) {
    %c0_i32 = arith.constant 0 : i32
    %c0_i32_0 = arith.constant 0 : i32
    %c0_i32_1 = arith.constant 0 : i32
    return %c0_i32, %c0_i32_0 : i32, i32
  }
  func.func @transform_2(%arg0: i32) -> (i32, i32) {
    %c0_i32 = arith.constant 0 : i32
    %c0_i32_0 = arith.constant 0 : i32
    %c0_i32_1 = arith.constant 0 : i32
    return %c0_i32, %c0_i32_0 : i32, i32
  }
  func.func @transform_3(%arg0: i32) -> (i32, i32) {
    %c0_i32 = arith.constant 0 : i32
    %c0_i32_0 = arith.constant 0 : i32
    %c0_i32_1 = arith.constant 0 : i32
    return %c0_i32, %c0_i32_0 : i32, i32
  }
  func.func @transform_4(%arg0: i32) -> (i32, i32) {
    %c0_i32 = arith.constant 0 : i32
    %c0_i32_0 = arith.constant 0 : i32
    %c0_i32_1 = arith.constant 0 : i32
    return %c0_i32, %c0_i32_0 : i32, i32
  }
  func.func @transform_5(%arg0: i32) -> (i32, i32) {
    %c0_i32 = arith.constant 0 : i32
    %c0_i32_0 = arith.constant 0 : i32
    %c0_i32_1 = arith.constant 0 : i32
    return %c0_i32, %c0_i32_0 : i32, i32
  }
  func.func @transform_6(%arg0: i32) -> (i32, i32) {
    %c0_i32 = arith.constant 0 : i32
    %c0_i32_0 = arith.constant 0 : i32
    %c0_i32_1 = arith.constant 0 : i32
    return %c0_i32, %c0_i32_0 : i32, i32
  }
  func.func @transform_7(%arg0: i32) -> (i32, i32) {
    %c0_i32 = arith.constant 0 : i32
    %c0_i32_0 = arith.constant 0 : i32
    %c0_i32_1 = arith.constant 0 : i32
    return %c0_i32, %c0_i32_0 : i32, i32
  }
  func.func @transform_8(%arg0: i32) -> (i32, i32) {
    %c0_i32 = arith.constant 0 : i32
    %c0_i32_0 = arith.constant 0 : i32
    %c0_i32_1 = arith.constant 0 : i32
    return %c0_i32, %c0_i32_0 : i32, i32
  }
  func.func @transform_9(%arg0: i32) -> (i32, i32) {
    %c0_i32 = arith.constant 0 : i32
    %c0_i32_0 = arith.constant 0 : i32
    %c0_i32_1 = arith.constant 0 : i32
    return %c0_i32, %c0_i32_0 : i32, i32
  }
  func.func @transform_10(%arg0: i32) -> (i32, i32) {
    %c0_i32 = arith.constant 0 : i32
    %c0_i32_0 = arith.constant 0 : i32
    %c0_i32_1 = arith.constant 0 : i32
    return %c0_i32, %c0_i32_0 : i32, i32
  }
  func.func @transform_11(%arg0: i32) -> (i32, i32) {
    %c0_i32 = arith.constant 0 : i32
    %c0_i32_0 = arith.constant 0 : i32
    return %arg0, %c0_i32 : i32, i32
  }
}

</mosaic_0001>

<llo_original>
// kernel: bottleneck_pallas.1
$region0: #{bottleneck_pallas.1}
  #allocation0 [shape = 'u32[]', space=smem, size = 0x4, offset = 0x4, fixed_abs, tag = 'smem constant byte address 0x4 - core index']
  #allocation1 [shape = 'u32[144,128]{1,0:T(1,128)}', space=vmem, size = 0x12000, scoped, tag = 'internal scratch']
  %s0 = inlined_call_operand.vmem [shape: f32[16,128], index: 0, kind: input, shape index: {}]
  %s1 = inlined_call_operand.vmem [shape: bf16[128,32], index: 1, kind: input, shape index: {}]
  %s2 = inlined_call_operand.hbm [shape: f32[1,32], index: 2, kind: input, shape index: {}]
  %s3 = inlined_call_operand.vmem [shape: bf16[96,64], index: 3, kind: input, shape index: {}]
  %s4 = inlined_call_operand.hbm [shape: f32[1,64], index: 4, kind: input, shape index: {}]
  %s5 = inlined_call_operand.vmem [shape: bf16[64,32], index: 5, kind: input, shape index: {}]
  %s6 = inlined_call_operand.hbm [shape: f32[1,32], index: 6, kind: input, shape index: {}]
  %s7 = inlined_call_operand.vmem [shape: bf16[32,64], index: 7, kind: input, shape index: {}]
  %s8 = inlined_call_operand.vmem [shape: f32[1,64], index: 8, kind: input, shape index: {}]
  %s9 = inlined_call_operand.vmem [shape: bf16[32,128], index: 9, kind: input, shape index: {}]
  %s10 = inlined_call_operand.vmem [shape: f32[1,128], index: 10, kind: input, shape index: {}]
  %s11 = inlined_call_operand.vmem [shape: f32[16,128], index: 11, kind: output, shape index: {}]
  %s12 = sld [smem:[#allocation0]]
  $region89: #{bottleneck_pallas.1} parent=0
    _
  %s14 = ssub.s32 1, %s12
  %s15 = scalar_select 0, %s14, %s12
  $region1: #{bottleneck_pallas.1} parent=0
    #allocation2 [shape = 'u8[512]{0}', space=vmem, size = 0x400, scoped, tag = 'input window, operand 2, single buffered']
    #allocation3 [shape = 's32[2]{0}', space=sflag, size = 0x8, scoped, tag = 'scoped memory for bottleneck_pallas.1']
    #allocation4 [shape = 'u8[512]{0}', space=vmem, size = 0x400, scoped, tag = 'input window, operand 4, single buffered']
    #allocation5 [shape = 's32[1]{0}', space=sflag, size = 0x4, scoped, tag = 'scoped memory for bottleneck_pallas.1']
    #allocation6 [shape = 'u8[512]{0}', space=vmem, size = 0x400, scoped, tag = 'input window, operand 6, single buffered']
    %16 = vsyncpa [#allocation3], 0
    %17 = vsyncpa [#allocation5], 0
    loop: start=0, step=1, limit=4
    $region2: #{bottleneck_pallas.1} parent=1 // loop_pre_header
      _
    $region3: #{bottleneck_pallas.1} parent=1 // loop_header
      %s19 = sphi 0, %s23
      %p20 = scmp.ge.s32.totalorder %s19, 4
      %s29 = sphi 0, %s31
      %s32 = sphi 0, %s29
      %s33 = sphi 0, %s32
      %s49 = sphi 0, %s33
      %s53 = sphi 0, %s53
      %s55 = sphi 0, %s53
      %s56 = sphi 0, %s55
      %s70 = sphi 0, %s56
      %s74 = sphi 0, %s74
      %s76 = sphi 0, %s74
      %s77 = sphi 0, %s76
      %s91 = sphi 0, %s77
      %s95 = sphi 0, %s95
      %s97 = sphi 0, %s95
      %s98 = sphi 0, %s97
      %s112 = sphi 0, %s98
      %s116 = sphi 0, %s116
      %s118 = sphi 0, %s116
      %s119 = sphi 0, %s118
      %s133 = sphi 0, %s119
      %s137 = sphi 0, %s137
      %s139 = sphi 0, %s137
      %s140 = sphi 0, %s139
      %s154 = sphi 0, %s140
      %s158 = sphi 0, %s158
      %s160 = sphi 0, %s158
      %s161 = sphi 0, %s160
      %s175 = sphi 0, %s161
      %s179 = sphi 0, %s179
      %s181 = sphi 0, %s179
      %s182 = sphi 0, %s181
      %s196 = sphi 0, %s182
      %s200 = sphi 0, %s200
      %s202 = sphi 0, %s200
      %s203 = sphi 0, %s202
      %s217 = sphi 0, %s203
      %s221 = sphi 0, %s221
      %s223 = sphi 0, %s221
      %s224 = sphi 0, %s223
      %s238 = sphi 0, %s224
      %s242 = sphi 0, %s242
      %s244 = sphi 0, %s242
      %s245 = sphi 0, %s244
      %s259 = sphi 0, %s245
      %s265 = sphi 0, %s267
      %s268 = sphi 0, %s265
      %s269 = sphi 0, %s268
      %s285 = sphi 0, %s269
    $region4: #{bottleneck_pallas.1} parent=1 // loop_header_branch
      %22 = sbr.rel (%p20) target = $region8
    $region5: #{bottleneck_pallas.1} parent=1 // loop_body
      %s24 = ssub.s32 %s19, 1
      %s25 = ssub.s32 %s19, 2
      %s26 = sadd.s32 %s19, 1
      %s27 = ssub.s32 %s19, %s26
      %p28 = scmp.eq.s32.totalorder %s27, 0
      %s30 = sadd.s32 %s29, 1
      %s31 = scalar_select %p28, %s29, %s30
      %p34 = pneg %p28
      %p35 = scmp.eq.s32.totalorder %s19, 1
      %p36 = por %p34, %p35
      %p37 = scmp.ne.s32.totalorder %s29, %s32
      %p38 = scmp.eq.s32.totalorder %s19, 0
      %p39 = por %p37, %p38
      %p40 = scmp.ne.s32.totalorder %s29, %s32
      %p41 = scmp.eq.s32.totalorder %s24, 1
      %p42 = por %p40, %p41
      %p43 = scmp.ne.s32.totalorder %s32, %s33
      %p44 = scmp.eq.s32.totalorder %s24, 0
      %p45 = por %p43, %p44
      %p46 = scmp.ne.s32.totalorder %s32, %s33
      %p47 = scmp.eq.s32.totalorder %s25, 1
      %p48 = por %p46, %p47
      %p50 = scmp.ne.s32.totalorder %s33, %s49
      %p51 = scmp.eq.s32.totalorder %s25, 0
      %p52 = por %p50, %p51
      %s54 = sadd.s32 %s53, 1
      %p57 = scmp.eq.s32.totalorder %s19, 1
      %p58 = scmp.ne.s32.totalorder %s53, %s55
      %p59 = scmp.eq.s32.totalorder %s19, 0
      %p60 = por %p58, %p59
      %p61 = scmp.ne.s32.totalorder %s53, %s55
      %p62 = scmp.eq.s32.totalorder %s24, 1
      %p63 = por %p61, %p62
      %p64 = scmp.ne.s32.totalorder %s55, %s56
      %p65 = scmp.eq.s32.totalorder %s24, 0
      %p66 = por %p64, %p65
      %p67 = scmp.ne.s32.totalorder %s55, %s56
      %p68 = scmp.eq.s32.totalorder %s25, 1
      %p69 = por %p67, %p68
      %p71 = scmp.ne.s32.totalorder %s56, %s70
      %p72 = scmp.eq.s32.totalorder %s25, 0
      %p73 = por %p71, %p72
      %s75 = sadd.s32 %s74, 1
      %p78 = scmp.eq.s32.totalorder %s19, 1
      %p79 = scmp.ne.s32.totalorder %s74, %s76
      %p80 = scmp.eq.s32.totalorder %s19, 0
      %p81 = por %p79, %p80
      %p82 = scmp.ne.s32.totalorder %s74, %s76
      %p83 = scmp.eq.s32.totalorder %s24, 1
      %p84 = por %p82, %p83
      %p85 = scmp.ne.s32.totalorder %s76, %s77
      %p86 = scmp.eq.s32.totalorder %s24, 0
      %p87 = por %p85, %p86
      %p88 = scmp.ne.s32.totalorder %s76, %s77
      %p89 = scmp.eq.s32.totalorder %s25, 1
      %p90 = por %p88, %p89
      %p92 = scmp.ne.s32.totalorder %s77, %s91
      %p93 = scmp.eq.s32.totalorder %s25, 0
      %p94 = por %p92, %p93
      %s96 = sadd.s32 %s95, 1
      %p99 = scmp.eq.s32.totalorder %s19, 1
      %p100 = scmp.ne.s32.totalorder %s95, %s97
      %p101 = scmp.eq.s32.totalorder %s19, 0
      %p102 = por %p100, %p101
      %p103 = scmp.ne.s32.totalorder %s95, %s97
      %p104 = scmp.eq.s32.totalorder %s24, 1
      %p105 = por %p103, %p104
      %p106 = scmp.ne.s32.totalorder %s97, %s98
      %p107 = scmp.eq.s32.totalorder %s24, 0
      %p108 = por %p106, %p107
      %p109 = scmp.ne.s32.totalorder %s97, %s98
      %p110 = scmp.eq.s32.totalorder %s25, 1
      %p111 = por %p109, %p110
      %p113 = scmp.ne.s32.totalorder %s98, %s112
      %p114 = scmp.eq.s32.totalorder %s25, 0
      %p115 = por %p113, %p114
      %s117 = sadd.s32 %s116, 1
      %p120 = scmp.eq.s32.totalorder %s19, 1
      %p121 = scmp.ne.s32.totalorder %s116, %s118
      %p122 = scmp.eq.s32.totalorder %s19, 0
      %p123 = por %p121, %p122
      %p124 = scmp.ne.s32.totalorder %s116, %s118
      %p125 = scmp.eq.s32.totalorder %s24, 1
      %p126 = por %p124, %p125
      %p127 = scmp.ne.s32.totalorder %s118, %s119
      %p128 = scmp.eq.s32.totalorder %s24, 0
      %p129 = por %p127, %p128
      %p130 = scmp.ne.s32.totalorder %s118, %s119
      %p131 = scmp.eq.s32.totalorder %s25, 1
      %p132 = por %p130, %p131
      %p134 = scmp.ne.s32.totalorder %s119, %s133
      %p135 = scmp.eq.s32.totalorder %s25, 0
      %p136 = por %p134, %p135
      %s138 = sadd.s32 %s137, 1
      %p141 = scmp.eq.s32.totalorder %s19, 1
      %p142 = scmp.ne.s32.totalorder %s137, %s139
      %p143 = scmp.eq.s32.totalorder %s19, 0
      %p144 = por %p142, %p143
      %p145 = scmp.ne.s32.totalorder %s137, %s139
      %p146 = scmp.eq.s32.totalorder %s24, 1
      %p147 = por %p145, %p146
      %p148 = scmp.ne.s32.totalorder %s139, %s140
      %p149 = scmp.eq.s32.totalorder %s24, 0
      %p150 = por %p148, %p149
      %p151 = scmp.ne.s32.totalorder %s139, %s140
      %p152 = scmp.eq.s32.totalorder %s25, 1
      %p153 = por %p151, %p152
      %p155 = scmp.ne.s32.totalorder %s140, %s154
      %p156 = scmp.eq.s32.totalorder %s25, 0
      %p157 = por %p155, %p156
      %s159 = sadd.s32 %s158, 1
      %p162 = scmp.eq.s32.totalorder %s19, 1
      %p163 = scmp.ne.s32.totalorder %s158, %s160
      %p164 = scmp.eq.s32.totalorder %s19, 0
      %p165 = por %p163, %p164
      %p166 = scmp.ne.s32.totalorder %s158, %s160
      %p167 = scmp.eq.s32.totalorder %s24, 1
      %p168 = por %p166, %p167
      %p169 = scmp.ne.s32.totalorder %s160, %s161
      %p170 = scmp.eq.s32.totalorder %s24, 0
      %p171 = por %p169, %p170
      %p172 = scmp.ne.s32.totalorder %s160, %s161
      %p173 = scmp.eq.s32.totalorder %s25, 1
      %p174 = por %p172, %p173
      %p176 = scmp.ne.s32.totalorder %s161, %s175
      %p177 = scmp.eq.s32.totalorder %s25, 0
      %p178 = por %p176, %p177
      %s180 = sadd.s32 %s179, 1
      %p183 = scmp.eq.s32.totalorder %s19, 1
      %p184 = scmp.ne.s32.totalorder %s179, %s181
      %p185 = scmp.eq.s32.totalorder %s19, 0
      %p186 = por %p184, %p185
      %p187 = scmp.ne.s32.totalorder %s179, %s181
      %p188 = scmp.eq.s32.totalorder %s24, 1
      %p189 = por %p187, %p188
      %p190 = scmp.ne.s32.totalorder %s181, %s182
      %p191 = scmp.eq.s32.totalorder %s24, 0
      %p192 = por %p190, %p191
      %p193 = scmp.ne.s32.totalorder %s181, %s182
      %p194 = scmp.eq.s32.totalorder %s25, 1
      %p195 = por %p193, %p194
      %p197 = scmp.ne.s32.totalorder %s182, %s196
      %p198 = scmp.eq.s32.totalorder %s25, 0
      %p199 = por %p197, %p198
      %s201 = sadd.s32 %s200, 1
      %p204 = scmp.eq.s32.totalorder %s19, 1
      %p205 = scmp.ne.s32.totalorder %s200, %s202
      %p206 = scmp.eq.s32.totalorder %s19, 0
      %p207 = por %p205, %p206
      %p208 = scmp.ne.s32.totalorder %s200, %s202
      %p209 = scmp.eq.s32.totalorder %s24, 1
      %p210 = por %p208, %p209
      %p211 = scmp.ne.s32.totalorder %s202, %s203
      %p212 = scmp.eq.s32.totalorder %s24, 0
      %p213 = por %p211, %p212
      %p214 = scmp.ne.s32.totalorder %s202, %s203
      %p215 = scmp.eq.s32.totalorder %s25, 1
      %p216 = por %p214, %p215
      %p218 = scmp.ne.s32.totalorder %s203, %s217
      %p219 = scmp.eq.s32.totalorder %s25, 0
      %p220 = por %p218, %p219
      %s222 = sadd.s32 %s221, 1
      %p225 = scmp.eq.s32.totalorder %s19, 1
      %p226 = scmp.ne.s32.totalorder %s221, %s223
      %p227 = scmp.eq.s32.totalorder %s19, 0
      %p228 = por %p226, %p227
      %p229 = scmp.ne.s32.totalorder %s221, %s223
      %p230 = scmp.eq.s32.totalorder %s24, 1
      %p231 = por %p229, %p230
      %p232 = scmp.ne.s32.totalorder %s223, %s224
      %p233 = scmp.eq.s32.totalorder %s24, 0
      %p234 = por %p232, %p233
      %p235 = scmp.ne.s32.totalorder %s223, %s224
      %p236 = scmp.eq.s32.totalorder %s25, 1
      %p237 = por %p235, %p236
      %p239 = scmp.ne.s32.totalorder %s224, %s238
      %p240 = scmp.eq.s32.totalorder %s25, 0
      %p241 = por %p239, %p240
      %s243 = sadd.s32 %s242, 1
      %p246 = scmp.eq.s32.totalorder %s19, 1
      %p247 = scmp.ne.s32.totalorder %s242, %s244
      %p248 = scmp.eq.s32.totalorder %s19, 0
      %p249 = por %p247, %p248
      %p250 = scmp.ne.s32.totalorder %s242, %s244
      %p251 = scmp.eq.s32.totalorder %s24, 1
      %p252 = por %p250, %p251
      %p253 = scmp.ne.s32.totalorder %s244, %s245
      %p254 = scmp.eq.s32.totalorder %s24, 0
      %p255 = por %p253, %p254
      %p256 = scmp.ne.s32.totalorder %s244, %s245
      %p257 = scmp.eq.s32.totalorder %s25, 1
      %p258 = por %p256, %p257
      %p260 = scmp.ne.s32.totalorder %s245, %s259
      %p261 = scmp.eq.s32.totalorder %s25, 0
      %p262 = por %p260, %p261
      %s263 = ssub.s32 %s19, %s26
      %p264 = scmp.eq.s32.totalorder %s263, 0
      %s266 = sadd.s32 %s265, 1
      %s267 = scalar_select %p264, %s265, %s266
      %p270 = pneg %p264
      %p271 = scmp.eq.s32.totalorder %s19, 1
      %p272 = por %p270, %p271
      %p273 = scmp.ne.s32.totalorder %s265, %s268
      %p274 = scmp.eq.s32.totalorder %s19, 0
      %p275 = por %p273, %p274
      %p276 = scmp.ne.s32.totalorder %s265, %s268
      %p277 = scmp.eq.s32.totalorder %s24, 1
      %p278 = por %p276, %p277
      %p279 = scmp.ne.s32.totalorder %s268, %s269
      %p280 = scmp.eq.s32.totalorder %s24, 0
      %p281 = por %p279, %p280
      %p282 = scmp.ne.s32.totalorder %s268, %s269
      %p283 = scmp.eq.s32.totalorder %s25, 1
      %p284 = por %p282, %p283
      %p286 = scmp.ne.s32.totalorder %s269, %s285
      %p287 = scmp.eq.s32.totalorder %s25, 0
      %p288 = por %p286, %p287
      %p289 = scmp.le.s32.totalorder 1, %s19
      %p290 = scmp.lt.s32.totalorder %s19, 3
      %p291 = pnand %p289, %p290
      %p292 = pneg %p291
      // Predicated region
      $region9: #{bottleneck_pallas.1} parent=5 // pred_check
        _
      $region10: #{bottleneck_pallas.1} parent=5 // pred_check_branch
        %294 = sbr.rel (%p291) target = $region12
      $region11: #{bottleneck_pallas.1} parent=5 // pred_region
        %s295 = ssub.s32 %s19, 1
        // Predicated region
        $region13: #{bottleneck_pallas.1} parent=11 // pred_check
          %p296 = pneg %p66
        $region14: #{bottleneck_pallas.1} parent=11 // pred_check_branch
          %298 = sbr.rel (%p296) target = $region16
        $region15: #{bottleneck_pallas.1} parent=11 // pred_region
          _
        $region16: #{bottleneck_pallas.1} parent=11 // pred_fallthru
          _
        // Predicated region
        $region17: #{bottleneck_pallas.1} parent=11 // pred_check
          %p299 = pneg %p87
        $region18: #{bottleneck_pallas.1} parent=11 // pred_check_branch
          %301 = sbr.rel (%p299) target = $region20
        $region19: #{bottleneck_pallas.1} parent=11 // pred_region
          %s303 = ssub.s32 16, 16
          %304 = vsyncadd [#allocation3], %s303
          %s306 = sshll.u32 [#allocation2], 4
          %s307 = int_to_ptr.vmem [resolvable:$true] %s306
          %309 = dma.hbm_to_vmem [thread:$0]  %s2, 16, %s307, [#allocation3]
        $region20: #{bottleneck_pallas.1} parent=11 // pred_fallthru
          _
        // Predicated region
        $region21: #{bottleneck_pallas.1} parent=11 // pred_check
          %p310 = pneg %p108
        $region22: #{bottleneck_pallas.1} parent=11 // pred_check_branch
          %312 = sbr.rel (%p310) target = $region24
        $region23: #{bottleneck_pallas.1} parent=11 // pred_region
          _
        $region24: #{bottleneck_pallas.1} parent=11 // pred_fallthru
          _
        // Predicated region
        $region25: #{bottleneck_pallas.1} parent=11 // pred_check
          %p313 = pneg %p129
        $region26: #{bottleneck_pallas.1} parent=11 // pred_check_branch
          %315 = sbr.rel (%p313) target = $region28
        $region27: #{bottleneck_pallas.1} parent=11 // pred_region
          %s317 = ssub.s32 16, 16
          %318 = vsyncadd [#allocation5], %s317
          %s320 = sshll.u32 [#allocation4], 4
          %s321 = int_to_ptr.vmem [resolvable:$true] %s320
          %323 = dma.hbm_to_vmem [thread:$0]  %s4, 16, %s321, [#allocation5]
        $region28: #{bottleneck_pallas.1} parent=11 // pred_fallthru
          _
        // Predicated region
        $region29: #{bottleneck_pallas.1} parent=11 // pred_check
          %p324 = pneg %p150
        $region30: #{bottleneck_pallas.1} parent=11 // pred_check_branch
          %326 = sbr.rel (%p324) target = $region32
        $region31: #{bottleneck_pallas.1} parent=11 // pred_region
          _
        $region32: #{bottleneck_pallas.1} parent=11 // pred_fallthru
          _
        // Predicated region
        $region33: #{bottleneck_pallas.1} parent=11 // pred_check
          %p327 = pneg %p171
        $region34: #{bottleneck_pallas.1} parent=11 // pred_check_branch
          %329 = sbr.rel (%p327) target = $region36
        $region35: #{bottleneck_pallas.1} parent=11 // pred_region
          %s331 = ssub.s32 16, 16
          %332 = vsyncadd [#allocation5], %s331
          %s334 = sshll.u32 [#allocation6], 4
          %s335 = int_to_ptr.vmem [resolvable:$true] %s334
          %337 = dma.hbm_to_vmem [thread:$0]  %s6, 16, %s335, [#allocation5]
        $region36: #{bottleneck_pallas.1} parent=11 // pred_fallthru
          _
        // Predicated region
        $region37: #{bottleneck_pallas.1} parent=11 // pred_check
          %p338 = pneg %p192
        $region38: #{bottleneck_pallas.1} parent=11 // pred_check_branch
          %340 = sbr.rel (%p338) target = $region40
        $region39: #{bottleneck_pallas.1} parent=11 // pred_region
          _
        $region40: #{bottleneck_pallas.1} parent=11 // pred_fallthru
          _
        // Predicated region
        $region41: #{bottleneck_pallas.1} parent=11 // pred_check
          %p341 = pneg %p213
        $region42: #{bottleneck_pallas.1} parent=11 // pred_check_branch
          %343 = sbr.rel (%p341) target = $region44
        $region43: #{bottleneck_pallas.1} parent=11 // pred_region
          _
        $region44: #{bottleneck_pallas.1} parent=11 // pred_fallthru
          _
        // Predicated region
        $region45: #{bottleneck_pallas.1} parent=11 // pred_check
          %p344 = pneg %p234
        $region46: #{bottleneck_pallas.1} parent=11 // pred_check_branch
          %346 = sbr.rel (%p344) target = $region48
        $region47: #{bottleneck_pallas.1} parent=11 // pred_region
          _
        $region48: #{bottleneck_pallas.1} parent=11 // pred_fallthru
          _
        // Predicated region
        $region49: #{bottleneck_pallas.1} parent=11 // pred_check
          %p347 = pneg %p255
        $region50: #{bottleneck_pallas.1} parent=11 // pred_check_branch
          %349 = sbr.rel (%p347) target = $region52
        $region51: #{bottleneck_pallas.1} parent=11 // pred_region
          _
        $region52: #{bottleneck_pallas.1} parent=11 // pred_fallthru
          _
      $region12: #{bottleneck_pallas.1} parent=5 // pred_fallthru
        _
      %p350 = scmp.lt.s32.totalorder %s19, 2
      // Predicated region
      $region53: #{bottleneck_pallas.1} parent=5 // pred_check
        %p351 = pneg %p350
      $region54: #{bottleneck_pallas.1} parent=5 // pred_check_branch
        %353 = sbr.rel (%p351) target = $region56
      $region55: #{bottleneck_pallas.1} parent=5 // pred_region
        // Predicated region
        $region57: #{bottleneck_pallas.1} parent=55 // pred_check
          %p354 = pneg %p39
        $region58: #{bottleneck_pallas.1} parent=55 // pred_check_branch
          %356 = sbr.rel (%p354) target = $region60
        $region59: #{bottleneck_pallas.1} parent=55 // pred_region
          %p357 = scmp.lt.s32.totalorder %s19, 1
          %s358 = scalar_select %p357, %s19, 1
          %s359 = smul.addr %s358, 8
          %s360 = scalar_lea.vmem %s0, %s359
        $region60: #{bottleneck_pallas.1} parent=55 // pred_fallthru
          _
      $region56: #{bottleneck_pallas.1} parent=5 // pred_fallthru
        _
      %p361 = scmp.le.s32.totalorder 1, %s19
      %p362 = scmp.lt.s32.totalorder %s19, 3
      %p363 = pnand %p361, %p362
      %p364 = pneg %p363
      // Predicated region
      $region61: #{bottleneck_pallas.1} parent=5 // pred_check
        _
      $region62: #{bottleneck_pallas.1} parent=5 // pred_check_branch
        %366 = sbr.rel (%p363) target = $region64
      $region63: #{bottleneck_pallas.1} parent=5 // pred_region
        %s367 = ssub.s32 %s19, 1
        // Predicated region
        $region65: #{bottleneck_pallas.1} parent=63 // pred_check
          %p368 = pneg %p87
        $region66: #{bottleneck_pallas.1} parent=63 // pred_check_branch
          %370 = sbr.rel (%p368) target = $region68
        $region67: #{bottleneck_pallas.1} parent=63 // pred_region
          %371 = dma.done [#allocation3], 16
        $region68: #{bottleneck_pallas.1} parent=63 // pred_fallthru
          _
        // Predicated region
        $region69: #{bottleneck_pallas.1} parent=63 // pred_check
          %p372 = pneg %p129
        $region70: #{bottleneck_pallas.1} parent=63 // pred_check_branch
          %374 = sbr.rel (%p372) target = $region72
        $region71: #{bottleneck_pallas.1} parent=63 // pred_region
          %375 = dma.done [#allocation5], 16
        $region72: #{bottleneck_pallas.1} parent=63 // pred_fallthru
          _
        // Predicated region
        $region73: #{bottleneck_pallas.1} parent=63 // pred_check
          %p376 = pneg %p171
        $region74: #{bottleneck_pallas.1} parent=63 // pred_check_branch
          %378 = sbr.rel (%p376) target = $region76
        $region75: #{bottleneck_pallas.1} parent=63 // pred_region
          %379 = dma.done [#allocation5], 16
        $region76: #{bottleneck_pallas.1} parent=63 // pred_fallthru
          _
        %p380 = scmp.lt.s32.totalorder %s24, 1
        %s381 = scalar_select %p380, %s24, 1
        %s382 = smul.addr %s381, 8
        %s383 = scalar_lea.vmem %s0, %s382
        %p384 = pneg %p45
        %p385 = pneg %p42
        %p386 = pneg %p66
        %p387 = pneg %p63
        %p388 = pneg %p87
        %p389 = pneg %p84
        %p390 = pneg %p108
        %p391 = pneg %p105
        %p392 = pneg %p129
        %p393 = pneg %p126
        %p394 = pneg %p150
        %p395 = pneg %p147
        %p396 = pneg %p171
        %p397 = pneg %p168
        %p398 = pneg %p192
        %p399 = pneg %p189
        %p400 = pneg %p213
        %p401 = pneg %p210
        %p402 = pneg %p234
        %p403 = pneg %p231
        %p404 = pneg %p255
        %p405 = pneg %p252
        %p406 = pneg %p281
        %p407 = pneg %p278
        %p408 = scmp.lt.s32.totalorder %s24, 1
        %s409 = scalar_select %p408, %s24, 1
        %s410 = smul.addr %s409, 8
        %s411 = scalar_lea.vmem %s11, %s410
        %p412 = scmp.lt.s32.totalorder %s24, 1
        %s413 = scalar_select %p412, %s24, 1
        %s414 = smul.addr %s413, 8
        %s415 = scalar_lea.vmem %s0, %s414
        %p416 = scmp.lt.s32.totalorder %s24, 1
        %s417 = scalar_select %p416, %s24, 1
        %s418 = smul.addr %s417, 8
        %s419 = scalar_lea.vmem %s11, %s418
        %v421 = vld [vmem:[%s415] sm:$0xff]
        %v422 = vpack.c.bf16 %v421, %v421
        %v423 = vld [vmem:[%s1] sm:$0xf]
        %v424 = vld [vmem:[%s1 + $0x4] sm:$0xf]
        %v425 = vld [vmem:[%s1 + $0x8] sm:$0xf]
        %v426 = vld [vmem:[%s1 + $0xc] sm:$0xf]
        %v427 = vld [vmem:[%s1 + $0x10] sm:$0xf]
        %v428 = vld [vmem:[%s1 + $0x14] sm:$0xf]
        %v429 = vld [vmem:[%s1 + $0x18] sm:$0xf]
        %v430 = vld [vmem:[%s1 + $0x1c] sm:$0xf]
        %v431 = vld [vmem:[%s1 + $0x20] sm:$0xf]
        %v432 = vld [vmem:[%s1 + $0x24] sm:$0xf]
        %v433 = vld [vmem:[%s1 + $0x28] sm:$0xf]
        %v434 = vld [vmem:[%s1 + $0x2c] sm:$0xf]
        %v435 = vld [vmem:[%s1 + $0x30] sm:$0xf]
        %v436 = vld [vmem:[%s1 + $0x34] sm:$0xf]
        %v437 = vld [vmem:[%s1 + $0x38] sm:$0xf]
        %v438 = vld [vmem:[%s1 + $0x3c] sm:$0xf]
        %v439 = vld [vmem:[#allocation2] sm:$0x1]
        %v441 = vlaneseq
        %v442 = vshrl.u32 %v441, 7
        %v443 = vsub.s32 0, %v442
        %v444 = vrot.slane %v439, %v443
        %v462 = vunpack.c.l.b16 %v423
        %v463 = vunpack.c.l.b16 %v424
        %v464 = vunpack.c.l.b16 %v425
        %v465 = vunpack.c.l.b16 %v426
        %v466 = vunpack.c.l.b16 %v427
        %v467 = vunpack.c.l.b16 %v428
        %v468 = vunpack.c.l.b16 %v429
        %v469 = vunpack.c.l.b16 %v430
        %v470 = vunpack.c.l.b16 %v431
        %v471 = vunpack.c.l.b16 %v432
        %v472 = vunpack.c.l.b16 %v433
        %v473 = vunpack.c.l.b16 %v434
        %v474 = vunpack.c.l.b16 %v435
        %v475 = vunpack.c.l.b16 %v436
        %v476 = vunpack.c.l.b16 %v437
        %v477 = vunpack.c.l.b16 %v438
        %v478 = vpack.c.b16 %v463, %v462
        %v479 = vpack.c.b16 %v465, %v464
        %v480 = vpack.c.b16 %v467, %v466
        %v481 = vpack.c.b16 %v469, %v468
        %v482 = vpack.c.b16 %v471, %v470
        %v483 = vpack.c.b16 %v473, %v472
        %v484 = vpack.c.b16 %v475, %v474
        %v485 = vpack.c.b16 %v477, %v476
        %494 = vmatprep.subr.bf16.mxu0 0
        %495 = vmatpush1.bf16.msra.mxu0 %v478
        %496 = vmatprep.subr.bf16.mxu0 0
        %497 = vmatpush1.bf16.msra.mxu0 %v479
        %498 = vmatprep.subr.bf16.mxu0 0
        %499 = vmatpush1.bf16.msra.mxu0 %v480
        %500 = vmatprep.subr.bf16.mxu0 0
        %501 = vmatpush1.bf16.msra.mxu0 %v481
        %502 = vmatprep.subr.bf16.mxu0 0
        %503 = vmatpush1.bf16.msra.mxu0 %v482
        %504 = vmatprep.subr.bf16.mxu0 0
        %505 = vmatpush1.bf16.msra.mxu0 %v483
        %506 = vmatprep.subr.bf16.mxu0 0
        %507 = vmatpush1.bf16.msra.mxu0 %v484
        %508 = vmatprep.subr.bf16.mxu0 0
        %509 = vmatpush1.bf16.msra.mxu0 %v485
        %510 = vmatprep.subr.bf16.mxu0 0
        %511 = vmatpush1.bf16.msra.mxu0 0
        %512 = vmatprep.subr.bf16.mxu0 0
        %513 = vmatpush1.bf16.msra.mxu0 0
        %514 = vmatprep.subr.bf16.mxu0 0
        %515 = vmatpush1.bf16.msra.mxu0 0
        %516 = vmatprep.subr.bf16.mxu0 0
        %517 = vmatpush1.bf16.msra.mxu0 0
        %518 = vmatprep.subr.bf16.mxu0 0
        %519 = vmatpush1.bf16.msra.mxu0 0
        %520 = vmatprep.subr.bf16.mxu0 0
        %521 = vmatpush1.bf16.msra.mxu0 0
        %522 = vmatprep.subr.bf16.mxu0 0
        %523 = vmatpush1.bf16.msra.mxu0 0
        %524 = vmatprep.subr.bf16.mxu0 0
        %525 = vmatpush1.bf16.msra.mxu0 0
        %526 = vmatprep.mubr.bf16.mxu0 0
        %527 = vmatmul.mubr.bf16.gmra.mrb[0].mxu0 %v422
        %v528 = vpop.f32.mrb[0].mxu0
        %v529 = vadd.f32 %v444, %v528
        %v530 = vpop.f32.mrb[0].mxu0
        %v531 = vpop.f32.mrb[0].mxu0
        %v532 = vpop.f32.mrb[0].mxu0
        %533 = vdwg.mxu0
        %v534 = vmax.f32 %v529, 0.0
        %v535 = vlaneseq
        %v536 = vshrl.u32 %v535, 7
        %vm537 = vcmp.lt.s32.totalorder %v536, 0
        %v538 = vsub.s32 0, %v536
        %v539 = vsel %vm537, %v538, %v536
        %v540 = vshrl.u32 %v539, 3
        %v541 = vand.u32 %v539, 7
        %v542 = vsub.s32 0, %v541
        %v543 = vsel %vm537, %v542, %v541
        %vm544 = vcmp.ne.s32.totalorder %v543, 0
        %vm545 = vcmp.lt.s32.totalorder %v543, 0
        %vm546 = vmand %vm545, %vm544
        %v547 = vadd.s32 %v543, 8
        %v548 = vsel %vm546, %v547, %v543
        %v550 = vrot.slane %v534, 7
        %vm552 = vcmask 1040384
        %v553 = vsel %vm552, 0.0, %v550
        %v554 = vsel %vm552, %v550, 0.0
        %vm555 = vcmp.ge.s32.totalorder %v548, 1
        %v556 = vsel %vm555, 1, 0
        %vm557 = vcmp.eq.s32.totalorder %v556, 1
        %v558 = vsel %vm557, %v553, 0.0
        %vm559 = vcmp.le.s32.totalorder %v548, 6
        %v560 = vsel %vm559, 1, 0
        %vm561 = vcmp.eq.s32.totalorder %v560, 1
        %vm564 = vcmask 1045504
        %v565 = vrot.slane %v553, 2
        %v566 = vrot.slane %v554, 2
        %v567 = vsel %vm564, %v565, %v566
        %v569 = vsel %vm561, %v567, 0.0
        %570 = vrot.lane.b32.xlu0 %v534, 32
        %v571 = vpop.permute.xlu0 %570
        %574 = vrot.lane.b32.xlu0 %v569, 64
        %v575 = vpop.permute.xlu0 %574
        %vm577 = vcmask 261120
        %v578 = vsel %vm577, %v558, %v571
        %vm579 = vcmask 523264
        %v580 = vsel %vm579, %v578, %v575
        %v581 = vpack.c.bf16 %v580, %v580
        %v582 = vld [vmem:[%s3] sm:$0xf]
        %v583 = vld [vmem:[%s3 + $0x4] sm:$0xf]
        %v584 = vld [vmem:[%s3 + $0x8] sm:$0xf]
        %v585 = vld [vmem:[%s3 + $0xc] sm:$0xf]
        %v586 = vld [vmem:[%s3 + $0x10] sm:$0xf]
        %v587 = vld [vmem:[%s3 + $0x14] sm:$0xf]
        %v588 = vld [vmem:[%s3 + $0x18] sm:$0xf]
        %v589 = vld [vmem:[%s3 + $0x1c] sm:$0xf]
        %v590 = vld [vmem:[%s3 + $0x20] sm:$0xf]
        %v591 = vld [vmem:[%s3 + $0x24] sm:$0xf]
        %v592 = vld [vmem:[%s3 + $0x28] sm:$0xf]
        %v593 = vld [vmem:[%s3 + $0x2c] sm:$0xf]
        %v594 = vld [vmem:[#allocation4] sm:$0x1]
        %v596 = vlaneseq
        %v597 = vshrl.u32 %v596, 7
        %v598 = vsub.s32 0, %v597
        %v599 = vrot.slane %v594, %v598
        %v613 = vunpack.c.l.b16 %v582
        %v614 = vunpack.c.l.b16 %v583
        %v615 = vunpack.c.l.b16 %v584
        %v616 = vunpack.c.l.b16 %v585
        %v617 = vunpack.c.l.b16 %v586
        %v618 = vunpack.c.l.b16 %v587
        %v619 = vunpack.c.l.b16 %v588
        %v620 = vunpack.c.l.b16 %v589
        %v621 = vunpack.c.l.b16 %v590
        %v622 = vunpack.c.l.b16 %v591
        %v623 = vunpack.c.l.b16 %v592
        %v624 = vunpack.c.l.b16 %v593
        %v625 = vpack.c.b16 %v614, %v613
        %v626 = vpack.c.b16 %v616, %v615
        %v627 = vpack.c.b16 %v618, %v617
        %v628 = vpack.c.b16 %v620, %v619
        %v629 = vpack.c.b16 %v622, %v621
        %v630 = vpack.c.b16 %v624, %v623
        %vm637 = vcmask 785408
        %v639 = vsel %vm637, %v581, 0
        %641 = vmatprep.subr.bf16.mxu0 0
        %642 = vmatpush1.bf16.msra.mxu0 %v625
        %643 = vmatprep.subr.bf16.mxu0 0
        %644 = vmatpush1.bf16.msra.mxu0 %v626
        %645 = vmatprep.subr.bf16.mxu0 0
        %646 = vmatpush1.bf16.msra.mxu0 %v627
        %647 = vmatprep.subr.bf16.mxu0 0
        %648 = vmatpush1.bf16.msra.mxu0 %v628
        %649 = vmatprep.subr.bf16.mxu0 0
        %650 = vmatpush1.bf16.msra.mxu0 %v629
        %651 = vmatprep.subr.bf16.mxu0 0
        %652 = vmatpush1.bf16.msra.mxu0 %v630
        %653 = vmatprep.subr.bf16.mxu0 0
        %654 = vmatpush1.bf16.msra.mxu0 0
        %655 = vmatprep.subr.bf16.mxu0 0
        %656 = vmatpush1.bf16.msra.mxu0 0
        %657 = vmatprep.subr.bf16.mxu0 0
        %658 = vmatpush1.bf16.msra.mxu0 0
        %659 = vmatprep.subr.bf16.mxu0 0
        %660 = vmatpush1.bf16.msra.mxu0 0
        %661 = vmatprep.subr.bf16.mxu0 0
        %662 = vmatpush1.bf16.msra.mxu0 0
        %663 = vmatprep.subr.bf16.mxu0 0
        %664 = vmatpush1.bf16.msra.mxu0 0
        %665 = vmatprep.subr.bf16.mxu0 0
        %666 = vmatpush1.bf16.msra.mxu0 0
        %667 = vmatprep.subr.bf16.mxu0 0
        %668 = vmatpush1.bf16.msra.mxu0 0
        %669 = vmatprep.subr.bf16.mxu0 0
        %670 = vmatpush1.bf16.msra.mxu0 0
        %671 = vmatprep.subr.bf16.mxu0 0
        %672 = vmatpush1.bf16.msra.mxu0 0
        %673 = vmatprep.mubr.bf16.mxu0 0
        %674 = vmatmul.mubr.bf16.gmra.mrb[0].mxu0 %v639
        %v675 = vpop.f32.mrb[0].mxu0
        %v676 = vadd.f32 %v599, %v675
        %v677 = vpop.f32.mrb[0].mxu0
        %v678 = vpop.f32.mrb[0].mxu0
        %v679 = vpop.f32.mrb[0].mxu0
        %680 = vdwg.mxu0
        %v681 = vmax.f32 %v676, 0.0
        %v682 = vsel %vm579, %v681, 0.0
        %v683 = vrot.slane %v682, 4
        %v684 = vadd.f32 %v682, %v683
        %v685 = vrot.slane %v684, 2
        %v686 = vadd.f32 %v684, %v685
        %v687 = vrot.slane %v686, 1
        %v688 = vadd.f32 %v686, %v687
        %v689 = vpack.c.bf16 %v688, %v688
        %v690 = vld [vmem:[%s5] sm:$0xf]
        %v691 = vld [vmem:[%s5 + $0x4] sm:$0xf]
        %v692 = vld [vmem:[%s5 + $0x8] sm:$0xf]
        %v693 = vld [vmem:[%s5 + $0xc] sm:$0xf]
        %v694 = vld [vmem:[%s5 + $0x10] sm:$0xf]
        %v695 = vld [vmem:[%s5 + $0x14] sm:$0xf]
        %v696 = vld [vmem:[%s5 + $0x18] sm:$0xf]
        %v697 = vld [vmem:[%s5 + $0x1c] sm:$0xf]
        %v698 = vld [vmem:[#allocation6] sm:$0x1]
        %v707 = vunpack.c.l.b16 %v690
        %v708 = vunpack.c.l.b16 %v691
        %v709 = vunpack.c.l.b16 %v692
        %v710 = vunpack.c.l.b16 %v693
        %v711 = vunpack.c.l.b16 %v694
        %v712 = vunpack.c.l.b16 %v695
        %v713 = vunpack.c.l.b16 %v696
        %v714 = vunpack.c.l.b16 %v697
        %v715 = vpack.c.b16 %v708, %v707
        %v716 = vpack.c.b16 %v710, %v709
        %v717 = vpack.c.b16 %v712, %v711
        %v718 = vpack.c.b16 %v714, %v713
        %v724 = vsel %vm579, %v689, 0
        %726 = vmatprep.subr.bf16.mxu0 0
        %727 = vmatpush1.bf16.msra.mxu0 %v715
        %728 = vmatprep.subr.bf16.mxu0 0
        %729 = vmatpush1.bf16.msra.mxu0 %v716
        %730 = vmatprep.subr.bf16.mxu0 0
        %731 = vmatpush1.bf16.msra.mxu0 %v717
        %732 = vmatprep.subr.bf16.mxu0 0
        %733 = vmatpush1.bf16.msra.mxu0 %v718
        %734 = vmatprep.subr.bf16.mxu0 0
        %735 = vmatpush1.bf16.msra.mxu0 0
        %736 = vmatprep.subr.bf16.mxu0 0
        %737 = vmatpush1.bf16.msra.mxu0 0
        %738 = vmatprep.subr.bf16.mxu0 0
        %739 = vmatpush1.bf16.msra.mxu0 0
        %740 = vmatprep.subr.bf16.mxu0 0
        %741 = vmatpush1.bf16.msra.mxu0 0
        %742 = vmatprep.subr.bf16.mxu0 0
        %743 = vmatpush1.bf16.msra.mxu0 0
        %744 = vmatprep.subr.bf16.mxu0 0
        %745 = vmatpush1.bf16.msra.mxu0 0
        %746 = vmatprep.subr.bf16.mxu0 0
        %747 = vmatpush1.bf16.msra.mxu0 0
        %748 = vmatprep.subr.bf16.mxu0 0
        %749 = vmatpush1.bf16.msra.mxu0 0
        %750 = vmatprep.subr.bf16.mxu0 0
        %751 = vmatpush1.bf16.msra.mxu0 0
        %752 = vmatprep.subr.bf16.mxu0 0
        %753 = vmatpush1.bf16.msra.mxu0 0
        %754 = vmatprep.subr.bf16.mxu0 0
        %755 = vmatpush1.bf16.msra.mxu0 0
        %756 = vmatprep.subr.bf16.mxu0 0
        %757 = vmatpush1.bf16.msra.mxu0 0
        %758 = vmatprep.mubr.bf16.mxu0 0
        %759 = vmatmul.mubr.bf16.gmra.mrb[0].mxu0 %v724
        %v760 = vpop.f32.mrb[0].mxu0
        %v761 = vadd.f32 %v698, %v760
        %v762 = vpop.f32.mrb[0].mxu0
        %v763 = vpop.f32.mrb[0].mxu0
        %v764 = vpop.f32.mrb[0].mxu0
        %765 = vdwg.mxu0
        %v766 = vmax.f32 %v761, 0.0
        %v767 = vpack.c.bf16 %v766, %v766
        %v768 = vld [vmem:[%s7] sm:$0xf]
        %v769 = vld [vmem:[%s7 + $0x4] sm:$0xf]
        %v770 = vld [vmem:[%s7 + $0x8] sm:$0xf]
        %v771 = vld [vmem:[%s7 + $0xc] sm:$0xf]
        %v772 = vld [vmem:[%s8] sm:$0x1]
        %v777 = vunpack.c.l.b16 %v768
        %v778 = vunpack.c.l.b16 %v769
        %v779 = vunpack.c.l.b16 %v770
        %v780 = vunpack.c.l.b16 %v771
        %v781 = vpack.c.b16 %v778, %v777
        %v782 = vpack.c.b16 %v780, %v779
        %v786 = vsel %vm577, %v767, 0
        %788 = vmatprep.subr.bf16.mxu0 0
        %789 = vmatpush1.bf16.msra.mxu0 %v781
        %790 = vmatprep.subr.bf16.mxu0 0
        %791 = vmatpush1.bf16.msra.mxu0 %v782
        %792 = vmatprep.subr.bf16.mxu0 0
        %793 = vmatpush1.bf16.msra.mxu0 0
        %794 = vmatprep.subr.bf16.mxu0 0
        %795 = vmatpush1.bf16.msra.mxu0 0
        %796 = vmatprep.subr.bf16.mxu0 0
        %797 = vmatpush1.bf16.msra.mxu0 0
        %798 = vmatprep.subr.bf16.mxu0 0
        %799 = vmatpush1.bf16.msra.mxu0 0
        %800 = vmatprep.subr.bf16.mxu0 0
        %801 = vmatpush1.bf16.msra.mxu0 0
        %802 = vmatprep.subr.bf16.mxu0 0
        %803 = vmatpush1.bf16.msra.mxu0 0
        %804 = vmatprep.subr.bf16.mxu0 0
        %805 = vmatpush1.bf16.msra.mxu0 0
        %806 = vmatprep.subr.bf16.mxu0 0
        %807 = vmatpush1.bf16.msra.mxu0 0
        %808 = vmatprep.subr.bf16.mxu0 0
        %809 = vmatpush1.bf16.msra.mxu0 0
        %810 = vmatprep.subr.bf16.mxu0 0
        %811 = vmatpush1.bf16.msra.mxu0 0
        %812 = vmatprep.subr.bf16.mxu0 0
        %813 = vmatpush1.bf16.msra.mxu0 0
        %814 = vmatprep.subr.bf16.mxu0 0
        %815 = vmatpush1.bf16.msra.mxu0 0
        %816 = vmatprep.subr.bf16.mxu0 0
        %817 = vmatpush1.bf16.msra.mxu0 0
        %818 = vmatprep.subr.bf16.mxu0 0
        %819 = vmatpush1.bf16.msra.mxu0 0
        %820 = vmatprep.mubr.bf16.mxu0 0
        %821 = vmatmul.mubr.bf16.gmra.mrb[0].mxu0 %v786
        %v822 = vpop.f32.mrb[0].mxu0
        %v823 = vadd.f32 %v772, %v822
        %v824 = vpop.f32.mrb[0].mxu0
        %v825 = vpop.f32.mrb[0].mxu0
        %v826 = vpop.f32.mrb[0].mxu0
        %827 = vdwg.mxu0
        %829 = vrot.lane.b32.xlu0 %v823, 96
        %v830 = vpop.permute.xlu0 %829
        %v832 = vmax.f32 %v823, %v830
        %v833 = vsub.f32 %v823, %v832
        %v834 = vmul.f32 %v833, 1.442695
        %v835 = vpow.pop %v834
        %837 = vrot.lane.b32.xlu0 %v832, 32
        %v838 = vpop.permute.xlu0 %837
        %v840 = vsub.f32 %v823, %v838
        %v841 = vmul.f32 %v840, 1.442695
        %v842 = vpow.pop %v841
        %844 = vrot.lane.b32.xlu0 %v842, 96
        %v845 = vpop.permute.xlu0 %844
        %v847 = vadd.f32 %v835, %v845
        %v848 = vrcp.pop %v847
        %v849 = vmul.f32 %v835, %v848
        %851 = vrot.lane.b32.xlu0 %v848, 32
        %v852 = vpop.permute.xlu0 %851
        %v854 = vmul.f32 %v842, %v852
        %v855 = vlaneseq
        %v856 = vshrl.u32 %v855, 7
        %v857 = vsub.s32 0, %v856
        %v858 = vrot.slane %v849, %v857
        %v859 = vmul.f32 %v681, %v858
        %v860 = vlaneseq
        %v861 = vshrl.u32 %v860, 7
        %v862 = vsub.s32 0, %v861
        %v863 = vrot.slane %v854, %v862
        %v864 = vmul.f32 %v681, %v863
        %866 = vrot.lane.b32.xlu0 %v864, 96
        %v867 = vpop.permute.xlu0 %866
        %v869 = vadd.f32 %v859, %v867
        %v870 = vpack.c.bf16 %v869, %v869
        %v871 = vld [vmem:[%s9] sm:$0xf]
        %v872 = vld [vmem:[%s9 + $0x4] sm:$0xf]
        %v873 = vld [vmem:[%s9 + $0x8] sm:$0xf]
        %v874 = vld [vmem:[%s9 + $0xc] sm:$0xf]
        %v875 = vld [vmem:[%s10] sm:$0x1]
        %v877 = vlaneseq
        %v878 = vshrl.u32 %v877, 7
        %v879 = vsub.s32 0, %v878
        %v880 = vrot.slane %v875, %v879
        %v886 = vunpack.c.l.b16 %v871
        %v887 = vunpack.c.l.b16 %v872
        %v888 = vunpack.c.l.b16 %v873
        %v889 = vunpack.c.l.b16 %v874
        %v890 = vpack.c.b16 %v887, %v886
        %v891 = vpack.c.b16 %v889, %v888
        %v895 = vsel %vm577, %v870, 0
        %897 = vmatprep.subr.bf16.mxu0 0
        %898 = vmatpush1.bf16.msra.mxu0 %v890
        %899 = vmatprep.subr.bf16.mxu0 0
        %900 = vmatpush1.bf16.msra.mxu0 %v891
        %901 = vmatprep.subr.bf16.mxu0 0
        %902 = vmatpush1.bf16.msra.mxu0 0
        %903 = vmatprep.subr.bf16.mxu0 0
        %904 = vmatpush1.bf16.msra.mxu0 0
        %905 = vmatprep.subr.bf16.mxu0 0
        %906 = vmatpush1.bf16.msra.mxu0 0
        %907 = vmatprep.subr.bf16.mxu0 0
        %908 = vmatpush1.bf16.msra.mxu0 0
        %909 = vmatprep.subr.bf16.mxu0 0
        %910 = vmatpush1.bf16.msra.mxu0 0
        %911 = vmatprep.subr.bf16.mxu0 0
        %912 = vmatpush1.bf16.msra.mxu0 0
        %913 = vmatprep.subr.bf16.mxu0 0
        %914 = vmatpush1.bf16.msra.mxu0 0
        %915 = vmatprep.subr.bf16.mxu0 0
        %916 = vmatpush1.bf16.msra.mxu0 0
        %917 = vmatprep.subr.bf16.mxu0 0
        %918 = vmatpush1.bf16.msra.mxu0 0
        %919 = vmatprep.subr.bf16.mxu0 0
        %920 = vmatpush1.bf16.msra.mxu0 0
        %921 = vmatprep.subr.bf16.mxu0 0
        %922 = vmatpush1.bf16.msra.mxu0 0
        %923 = vmatprep.subr.bf16.mxu0 0
        %924 = vmatpush1.bf16.msra.mxu0 0
        %925 = vmatprep.subr.bf16.mxu0 0
        %926 = vmatpush1.bf16.msra.mxu0 0
        %927 = vmatprep.subr.bf16.mxu0 0
        %928 = vmatpush1.bf16.msra.mxu0 0
        %929 = vmatprep.mubr.bf16.mxu0 0
        %930 = vmatmul.mubr.bf16.gmra.mrb[0].mxu0 %v895
        %v931 = vpop.f32.mrb[0].mxu0
        %v932 = vadd.f32 %v880, %v931
        %v933 = vpop.f32.mrb[0].mxu0
        %v934 = vpop.f32.mrb[0].mxu0
        %v935 = vpop.f32.mrb[0].mxu0
        %936 = vdwg.mxu0
        %v937 = vadd.f32 %v932, %v421
        %v938 = vmax.f32 %v937, 0.0
        %939 = vst [vmem:[%s419] sm:$0xff] %v938
        %p940 = scmp.lt.s32.totalorder %s24, 1
        %s941 = scalar_select %p940, %s24, 1
        %s942 = smul.addr %s941, 8
        %s943 = scalar_lea.vmem %s11, %s942
        // Predicated region
        $region77: #{bottleneck_pallas.1} parent=63 // pred_check
          %p944 = pneg %p278
        $region78: #{bottleneck_pallas.1} parent=63 // pred_check_branch
          %946 = sbr.rel (%p944) target = $region80
        $region79: #{bottleneck_pallas.1} parent=63 // pred_region
          _
        $region80: #{bottleneck_pallas.1} parent=63 // pred_fallthru
          _
      $region64: #{bottleneck_pallas.1} parent=5 // pred_fallthru
        _
      %p947 = scmp.le.s32.totalorder 2, %s19
      // Predicated region
      $region81: #{bottleneck_pallas.1} parent=5 // pred_check
        %p948 = pneg %p947
      $region82: #{bottleneck_pallas.1} parent=5 // pred_check_branch
        %950 = sbr.rel (%p948) target = $region84
      $region83: #{bottleneck_pallas.1} parent=5 // pred_region
        %s951 = ssub.s32 %s19, 2
        // Predicated region
        $region85: #{bottleneck_pallas.1} parent=83 // pred_check
          %p952 = pneg %p284
        $region86: #{bottleneck_pallas.1} parent=83 // pred_check_branch
          %954 = sbr.rel (%p952) target = $region88
        $region87: #{bottleneck_pallas.1} parent=83 // pred_region
          %p955 = scmp.lt.s32.totalorder %s25, 1
          %s956 = scalar_select %p955, %s25, 1
          %s957 = smul.addr %s956, 8
          %s958 = scalar_lea.vmem %s11, %s957
        $region88: #{bottleneck_pallas.1} parent=83 // pred_fallthru
          _
      $region84: #{bottleneck_pallas.1} parent=5 // pred_fallthru
        _
    $region6: #{bottleneck_pallas.1} parent=1 // loop_footer
      %s23 = sadd.s32 1, %s19
    $region7: #{bottleneck_pallas.1} parent=1 // loop_footer_branch
      %18 = sbr.rel target = $region3
    $region8: #{bottleneck_pallas.1} parent=1 // loop_exit
      _
    %959 = vsyncpa [#allocation3], 1
    %s960 = scalar_lea.sflag [#allocation3], 1
    %961 = vsyncpa %s960, 1
    %962 = vsyncpa [#allocation5], 1

</llo_original>
